<compile_context>
chip_gen: v6e
topology: v6e:2x2x1
jax: 0.10.0
libtpu: 0.0.40
codegen_flags: <defaults>
</compile_context>

<pallas_src>
import functools

import jax
import jax.numpy as jnp
from jax.experimental import pallas as pl
from jax.experimental.pallas import tpu as pltpu

BN_EPS = 1e-5
LANE = 128


def _round_up(x, m):
    return ((x + m - 1) // m) * m


def _vmem_limit_bytes():
    """Explicit scoped-VMEM budget: ~75% of physical, capped at 100 MiB."""
    try:
        cap = int(pltpu.get_tpu_info().vmem_capacity_bytes)
    except Exception:
        cap = 64 << 20  # conservative (v7x per-TC size)
    return max(32 << 20, min((cap * 3) // 4, 100 << 20))


# --------------------------------------------------------------------------
# Fused path: BN stats + BN apply + ReLU + Linear (+ optional concat) in one call
# --------------------------------------------------------------------------
def _fused_kernel(x_ref, gamma_ref, beta_ref, w_ref, b_ref, o_ref, *,
                  inv_n, dot_in_bf16, fold_concat, din):
    x = x_ref[...].astype(jnp.float32)
    mean = jnp.sum(x, axis=0, keepdims=True) * inv_n
    xc = x - mean
    var = jnp.sum(xc * xc, axis=0, keepdims=True) * inv_n  # centered: no cancellation
    scale = gamma_ref[...].astype(jnp.float32) * jax.lax.rsqrt(var + BN_EPS)
    shift = beta_ref[...].astype(jnp.float32) - mean * scale
    act = jnp.maximum(x * scale + shift, 0.0)

    w = w_ref[...]
    if dot_in_bf16:
        act = act.astype(jnp.bfloat16)   # W already cast once in the wrapper
    else:
        w = w.astype(jnp.float32)
    fc = jnp.dot(act, w, preferred_element_type=jnp.float32)
    fc = fc + b_ref[...].astype(jnp.float32)

    # TODO(synk): dropout path (dropRate > 0) would use pltpu.prng_seed /
    # pltpu.prng_random_bits; default dropRate=0.0 so it is a no-op here.
    if fold_concat:
        # Lane-aligned Din/Dout: emit torch.cat([x, fc], 1) directly.
        o_ref[:, :din] = x_ref[...]
        o_ref[:, din:] = fc.astype(o_ref.dtype)
    else:
        o_ref[...] = fc.astype(o_ref.dtype)


# --------------------------------------------------------------------------
# Two-pass path, pass 1: batch statistics -> fused BN scale/shift
# grid = (feature tiles [parallel], row tiles [arbitrary reduction])
# --------------------------------------------------------------------------
def _bn_stats_kernel(x_ref, gamma_ref, beta_ref, scale_ref, shift_ref, *,
                     inv_n, n_rows, tm):
    r = pl.program_id(1)

    @pl.when(r == 0)
    def _():
        scale_ref[...] = jnp.zeros_like(scale_ref)   # running sum(x)
        shift_ref[...] = jnp.zeros_like(shift_ref)   # running sum(x*x)

    x = x_ref[...].astype(jnp.float32)
    if n_rows % tm != 0:
        # cdiv grid: mask rows of the (partial) last block out of the reduction.
        rows = r * tm + jax.lax.broadcasted_iota(jnp.int32, (tm, 1), 0)
        x = jnp.where(rows < n_rows, x, 0.0)
    scale_ref[...] += jnp.sum(x, axis=0, keepdims=True)
    shift_ref[...] += jnp.sum(x * x, axis=0, keepdims=True)

    @pl.when(r == pl.num_programs(1) - 1)
    def _():
        mean = scale_ref[...] * inv_n
        # E[x^2] - mean^2 (guard tiny negatives from cancellation).
        var = jnp.maximum(shift_ref[...] * inv_n - mean * mean, 0.0)
        scale = gamma_ref[...].astype(jnp.float32) * jax.lax.rsqrt(var + BN_EPS)
        scale_ref[...] = scale
        shift_ref[...] = beta_ref[...].astype(jnp.float32) - mean * scale


# --------------------------------------------------------------------------
# Two-pass path, pass 2: fused BN-apply + ReLU + Linear
# grid = (row tiles [parallel], Dout tiles [parallel])
# --------------------------------------------------------------------------
def _bn_relu_fc_kernel(x_ref, scale_ref, shift_ref, w_ref, b_ref, o_ref, *,
                       dot_in_bf16):
    x = x_ref[...].astype(jnp.float32)
    act = jnp.maximum(x * scale_ref[...] + shift_ref[...], 0.0)   # folded BN + ReLU

    w = w_ref[...]
    if dot_in_bf16:
        act = act.astype(jnp.bfloat16)
    else:
        w = w.astype(jnp.float32)
    fc = jnp.dot(act, w, preferred_element_type=jnp.float32)
    o_ref[...] = (fc + b_ref[...].astype(jnp.float32)).astype(o_ref.dtype)


# --------------------------------------------------------------------------
# Tile selection (VMEM-budget aware)
# --------------------------------------------------------------------------
def _pick_stats_tiles(n, din, budget):
    if din <= 512:
        tf = din
    else:
        tf = next((c for c in (512, 256, 128) if din % c == 0), din)
    cap = _round_up(n, 8)
    tm = min(8, cap)
    for cand in (2048, 1024, 512, 256, 128, 64, 32, 16, 8):
        cand = min(cand, cap)
        if 2 * cand * tf * 4 + 4 * tf * 4 <= budget:   # double-buffered x tile
            tm = cand
            break
    return tm, tf


def _pick_apply_tiles(n, din, dout_p, w_itemsize, out_itemsize, budget):
    if dout_p <= 512:
        tn = dout_p
    else:
        tn = next((c for c in (512, 256, 128) if dout_p % c == 0), 128)
    cap = _round_up(n, 8)
    tm = min(8, cap)
    for cand in (512, 256, 128, 64, 32, 16, 8):
        cand = min(cand, cap)
        est = (2 * cand * din * 4            # x tile (f32), double-buffered
               + 2 * din * tn * w_itemsize   # weight tile, double-buffered
               + 2 * cand * tn * out_itemsize
               + 4 * din * 4)                # scale/shift
        if est <= budget:
            tm = cand
            break
    return tm, tn


# --------------------------------------------------------------------------
# Wrapper
# --------------------------------------------------------------------------
def basic_block(x, gamma, beta, w_t, b, *, dot_in_bf16=None, force_two_pass=False):
    """x: (N, Din); gamma/beta: (1, Din); w_t: (Din, Dout); b: (1, Dout).

    Returns (N, Din + Dout) == torch.cat([x, fc1(relu(bn1(x)))], dim=1).
    """
    n, din = x.shape
    dout = w_t.shape[1]

    # Lane-dense output: pad Dout (and W / bias columns) to a multiple of 128.
    dout_p = _round_up(dout, LANE)
    if dout_p != dout:
        w_t = jnp.pad(w_t, ((0, 0), (0, dout_p - dout)))
        b = jnp.pad(b, ((0, 0), (0, dout_p - dout)))

    if dot_in_bf16 is None:
        # Native bf16 MXU feed pays off at realistic sizes; keep f32 at toy sizes.
        dot_in_bf16 = din >= 256 and dout_p >= 256
    if dot_in_bf16:
        w_t = w_t.astype(jnp.bfloat16)   # cast once in the wrapper, not per step

    vmem_limit = _vmem_limit_bytes()
    budget = (vmem_limit * 3) // 5

    def cparams(sem):
        return pltpu.CompilerParams(dimension_semantics=sem,
                                    vmem_limit_bytes=vmem_limit)

    w_itemsize = w_t.dtype.itemsize
    out_itemsize = x.dtype.itemsize

    # ---- Fused single-call path when everything fits comfortably in VMEM ----
    fold_concat = (din % LANE == 0) and (dout % LANE == 0)
    out_width = din + dout_p if fold_concat else dout_p
    fused_bytes = (3 * n * din * 4
                   + 2 * din * dout_p * w_itemsize
                   + 3 * n * out_width * 4)
    if not force_two_pass and fused_bytes <= min(budget, 24 << 20):
        out = pl.pallas_call(
            functools.partial(_fused_kernel, inv_n=1.0 / n,
                              dot_in_bf16=dot_in_bf16,
                              fold_concat=fold_concat, din=din),
            grid=(1,),
            in_specs=[
                pl.BlockSpec((n, din), lambda i: (0, 0)),       # x (whole batch)
                pl.BlockSpec((1, din), lambda i: (0, 0)),       # gamma
                pl.BlockSpec((1, din), lambda i: (0, 0)),       # beta
                pl.BlockSpec((din, dout_p), lambda i: (0, 0)),  # w_t
                pl.BlockSpec((1, dout_p), lambda i: (0, 0)),    # bias
            ],
            out_specs=pl.BlockSpec((n, out_width), lambda i: (0, 0)),
            out_shape=jax.ShapeDtypeStruct((n, out_width), x.dtype),
            compiler_params=cparams(("arbitrary",)),
        )(x, gamma, beta, w_t, b)
        if fold_concat:
            return out
        return jnp.concatenate([x, out[:, :dout]], axis=1)

    # ---- Two-pass tiled path (large N / forced) ----
    # Pass 1: full-batch BN statistics -> folded (scale, shift).
    tm_s, tf = _pick_stats_tiles(n, din, budget)
    scale, shift = pl.pallas_call(
        functools.partial(_bn_stats_kernel, inv_n=1.0 / n, n_rows=n, tm=tm_s),
        grid=(pl.cdiv(din, tf), pl.cdiv(n, tm_s)),
        in_specs=[
            pl.BlockSpec((tm_s, tf), lambda f, r: (r, f)),   # x row/feature tile
            pl.BlockSpec((1, tf), lambda f, r: (0, f)),      # gamma
            pl.BlockSpec((1, tf), lambda f, r: (0, f)),      # beta
        ],
        out_specs=[
            pl.BlockSpec((1, tf), lambda f, r: (0, f)),      # scale (resident acc)
            pl.BlockSpec((1, tf), lambda f, r: (0, f)),      # shift (resident acc)
        ],
        out_shape=[
            jax.ShapeDtypeStruct((1, din), jnp.float32),
            jax.ShapeDtypeStruct((1, din), jnp.float32),
        ],
        compiler_params=cparams(("parallel", "arbitrary")),
    )(x, gamma, beta)

    # Pass 2: BN-apply + ReLU + Linear; rows and Dout tiles both parallel.
    tm_a, tn = _pick_apply_tiles(n, din, dout_p, w_itemsize, out_itemsize, budget)
    fc = pl.pallas_call(
        functools.partial(_bn_relu_fc_kernel, dot_in_bf16=dot_in_bf16),
        grid=(pl.cdiv(n, tm_a), dout_p // tn),
        in_specs=[
            pl.BlockSpec((tm_a, din), lambda i, j: (i, 0)),   # x row tile (resident over j)
            pl.BlockSpec((1, din), lambda i, j: (0, 0)),      # scale
            pl.BlockSpec((1, din), lambda i, j: (0, 0)),      # shift
            pl.BlockSpec((din, tn), lambda i, j: (0, j)),     # weight column tile
            pl.BlockSpec((1, tn), lambda i, j: (0, j)),       # bias tile
        ],
        out_specs=pl.BlockSpec((tm_a, tn), lambda i, j: (i, j)),
        out_shape=jax.ShapeDtypeStruct((n, dout_p), x.dtype),
        compiler_params=cparams(("parallel", "parallel")),
    )(x, scale, shift, w_t, b)

    if dout_p != dout:
        fc = fc[:, :dout]
    # TODO(synk): when Din and Dout are both multiples of 128 the concat could
    # also be folded into pass 2 (widened output block); kept in XLA here.
    return jnp.concatenate([x, fc], axis=1)


# --------------------------------------------------------------------------
# Self-test
# --------------------------------------------------------------------------
if __name__ == "__main__":
    def reference(x, gamma, beta, w_t, b):
        mean = jnp.mean(x, axis=0, keepdims=True)
        var = jnp.mean((x - mean) ** 2, axis=0, keepdims=True)
        act = jnp.maximum((x - mean) * jax.lax.rsqrt(var + BN_EPS) * gamma + beta, 0.0)
        return jnp.concatenate([x, act @ w_t + b], axis=1)

    def make_case(key, n, din, dout):
        kx, kw, kb, kg, kbt = jax.random.split(key, 5)
        x = jax.random.normal(kx, (n, din), dtype=jnp.float32)
        gamma = 1.0 + 0.1 * jax.random.normal(kg, (1, din), dtype=jnp.float32)
        beta = 0.1 * jax.random.normal(kbt, (1, din), dtype=jnp.float32)
        bound = 1.0 / (din ** 0.5)
        w = jax.random.uniform(kw, (dout, din), minval=-bound, maxval=bound,
                               dtype=jnp.float32)
        b = jax.random.uniform(kb, (1, dout), minval=-bound, maxval=bound,
                               dtype=jnp.float32)
        return x, gamma, beta, jnp.transpose(w), b   # w stored transposed: act @ W^T

    key = jax.random.PRNGKey(0)
    keys = jax.random.split(key, 4)

    # 1) Module's toy size: fused path, padded Dout, XLA concat.
    x, g, bt, wt, bb = make_case(keys[0], 8, 32, 32)
    out = basic_block(x, g, bt, wt, bb)
    jax.block_until_ready(out)
    ref = reference(x, g, bt, wt, bb)
    assert out.shape == (8, 64)
    assert jnp.allclose(out, ref, atol=2e-4, rtol=2e-4), "toy fused mismatch"

    # 2) Lane-aligned dims: fused path with the concat folded into the kernel.
    x, g, bt, wt, bb = make_case(keys[1], 64, 128, 128)
    out = basic_block(x, g, bt, wt, bb)
    ref = reference(x, g, bt, wt, bb)
    assert jnp.allclose(out, ref, atol=2e-4, rtol=2e-4), "fused+fold mismatch"

    # 3) Two-pass tiled path with a non-divisible batch (cdiv grid + row mask).
    x, g, bt, wt, bb = make_case(keys[2], 600, 128, 96)
    out = basic_block(x, g, bt, wt, bb, force_two_pass=True)
    ref = reference(x, g, bt, wt, bb)
    assert jnp.allclose(out, ref, atol=3e-4, rtol=3e-4), "two-pass mismatch"

    # 4) bf16 MXU feed (f32 accumulation) at a modest size.
    x, g, bt, wt, bb = make_case(keys[3], 64, 256, 256)
    out = basic_block(x, g, bt, wt, bb, dot_in_bf16=True)
    ref = reference(x, g, bt, wt, bb)
    assert jnp.allclose(out, ref, atol=5e-2, rtol=5e-2), "bf16 mismatch"

    jax.block_until_ready(out)
    print("KERNEL_OK")
</pallas_src>

<mosaic_0001>
module attributes {stable_mosaic.version = 11 : i64} {
  func.func @_fused_kernel(%arg0: i32, %arg1: memref<8x32xf32, #tpu.memory_space<vmem>>, %arg2: memref<1x32xf32, #tpu.memory_space<vmem>>, %arg3: memref<1x32xf32, #tpu.memory_space<vmem>>, %arg4: memref<32x128xf32, #tpu.memory_space<vmem>>, %arg5: memref<1x128xf32, #tpu.memory_space<vmem>>, %arg6: memref<8x128xf32, #tpu.memory_space<vmem>>) attributes {dimension_semantics = [#tpu.dimension_semantics<arbitrary>], iteration_bounds = array<i64: 1>, scalar_prefetch = 0 : i64, scratch_operands = 0 : i64, tpu.core_type = #tpu.core_type<tc>, window_params = [{pipeline_mode = #tpu.pipeline_mode<synchronous>, transform_indices = @transform_0, window_bounds = array<i64: 8, 32>}, {pipeline_mode = #tpu.pipeline_mode<synchronous>, transform_indices = @transform_1, window_bounds = array<i64: 1, 32>}, {pipeline_mode = #tpu.pipeline_mode<synchronous>, transform_indices = @transform_2, window_bounds = array<i64: 1, 32>}, {pipeline_mode = #tpu.pipeline_mode<synchronous>, transform_indices = @transform_3, window_bounds = array<i64: 32, 128>}, {pipeline_mode = #tpu.pipeline_mode<synchronous>, transform_indices = @transform_4, window_bounds = array<i64: 1, 128>}, {pipeline_mode = #tpu.pipeline_mode<synchronous>, transform_indices = @transform_5, window_bounds = array<i64: 8, 128>}]} {
    %c0 = arith.constant 0 : index
    %c0_0 = arith.constant 0 : index
    %0 = vector.load %arg1[%c0, %c0_0] : memref<8x32xf32, #tpu.memory_space<vmem>>, vector<8x32xf32>
    %cst = arith.constant dense<0.000000e+00> : vector<32xf32>
    %1 = vector.multi_reduction <add>, %0, %cst [0] : vector<8x32xf32> to vector<32xf32>
    %2 = vector.shape_cast %1 : vector<32xf32> to vector<1x32xf32>
    %cst_1 = arith.constant 1.250000e-01 : f32
    %3 = vector.broadcast %cst_1 : f32 to vector<1x32xf32>
    %4 = arith.mulf %2, %3 : vector<1x32xf32>
    %5 = vector.broadcast %4 : vector<1x32xf32> to vector<8x32xf32>
    %6 = arith.subf %0, %5 : vector<8x32xf32>
    %7 = arith.mulf %6, %6 : vector<8x32xf32>
    %cst_2 = arith.constant dense<0.000000e+00> : vector<32xf32>
    %8 = vector.multi_reduction <add>, %7, %cst_2 [0] : vector<8x32xf32> to vector<32xf32>
    %9 = vector.shape_cast %8 : vector<32xf32> to vector<1x32xf32>
    %cst_3 = arith.constant 1.250000e-01 : f32
    %10 = vector.broadcast %cst_3 : f32 to vector<1x32xf32>
    %11 = arith.mulf %9, %10 : vector<1x32xf32>
    %c0_4 = arith.constant 0 : index
    %c0_5 = arith.constant 0 : index
    %12 = vector.load %arg2[%c0_4, %c0_5] : memref<1x32xf32, #tpu.memory_space<vmem>>, vector<1x32xf32>
    %cst_6 = arith.constant 9.99999974E-6 : f32
    %13 = vector.broadcast %cst_6 : f32 to vector<1x32xf32>
    %14 = arith.addf %11, %13 : vector<1x32xf32>
    %15 = math.rsqrt %14 : vector<1x32xf32>
    %16 = arith.mulf %12, %15 : vector<1x32xf32>
    %c0_7 = arith.constant 0 : index
    %c0_8 = arith.constant 0 : index
    %17 = vector.load %arg3[%c0_7, %c0_8] : memref<1x32xf32, #tpu.memory_space<vmem>>, vector<1x32xf32>
    %18 = arith.mulf %4, %16 : vector<1x32xf32>
    %19 = arith.subf %17, %18 : vector<1x32xf32>
    %20 = vector.broadcast %16 : vector<1x32xf32> to vector<8x32xf32>
    %21 = arith.mulf %0, %20 : vector<8x32xf32>
    %22 = vector.broadcast %19 : vector<1x32xf32> to vector<8x32xf32>
    %23 = arith.addf %21, %22 : vector<8x32xf32>
    %cst_9 = arith.constant 0.000000e+00 : f32
    %24 = vector.broadcast %cst_9 : f32 to vector<8x32xf32>
    %25 = arith.maximumf %23, %24 : vector<8x32xf32>
    %c0_10 = arith.constant 0 : index
    %c0_11 = arith.constant 0 : index
    %26 = vector.load %arg4[%c0_10, %c0_11] : memref<32x128xf32, #tpu.memory_space<vmem>>, vector<32x128xf32>
    %cst_12 = arith.constant dense<0.000000e+00> : vector<8x128xf32>
    %27 = tpu.matmul %25, %26, %cst_12 {dimension_numbers = #tpu.dot_dimension_numbers<[1], [0], [0], [1], [0, 0, 1, 1], [], []>} : vector<8x32xf32>, vector<32x128xf32>, vector<8x128xf32> -> vector<8x128xf32>
    %c0_13 = arith.constant 0 : index
    %c0_14 = arith.constant 0 : index
    %28 = vector.load %arg5[%c0_13, %c0_14] : memref<1x128xf32, #tpu.memory_space<vmem>>, vector<1x128xf32>
    %29 = vector.broadcast %28 : vector<1x128xf32> to vector<8x128xf32>
    %30 = arith.addf %27, %29 : vector<8x128xf32>
    %c0_15 = arith.constant 0 : index
    %c0_16 = arith.constant 0 : index
    %31 = vector.load %arg6[%c0_15, %c0_16] : memref<8x128xf32, #tpu.memory_space<vmem>>, vector<8x128xf32>
    tpu.vector_store %arg6[%c0_15, %c0_16], %30 {strides = array<i32>} : memref<8x128xf32, #tpu.memory_space<vmem>>, vector<8x128xf32>,
    return
  }
  func.func @transform_0(%arg0: i32) -> (i32, i32) {
    %c0_i32 = arith.constant 0 : i32
    %c0_i32_0 = arith.constant 0 : i32
    %c0_i32_1 = arith.constant 0 : i32
    return %c0_i32, %c0_i32_0 : i32, i32
  }
  func.func @transform_1(%arg0: i32) -> (i32, i32) {
    %c0_i32 = arith.constant 0 : i32
    %c0_i32_0 = arith.constant 0 : i32
    %c0_i32_1 = arith.constant 0 : i32
    return %c0_i32, %c0_i32_0 : i32, i32
  }
  func.func @transform_2(%arg0: i32) -> (i32, i32) {
    %c0_i32 = arith.constant 0 : i32
    %c0_i32_0 = arith.constant 0 : i32
    %c0_i32_1 = arith.constant 0 : i32
    return %c0_i32, %c0_i32_0 : i32, i32
  }
  func.func @transform_3(%arg0: i32) -> (i32, i32) {
    %c0_i32 = arith.constant 0 : i32
    %c0_i32_0 = arith.constant 0 : i32
    %c0_i32_1 = arith.constant 0 : i32
    return %c0_i32, %c0_i32_0 : i32, i32
  }
  func.func @transform_4(%arg0: i32) -> (i32, i32) {
    %c0_i32 = arith.constant 0 : i32
    %c0_i32_0 = arith.constant 0 : i32
    %c0_i32_1 = arith.constant 0 : i32
    return %c0_i32, %c0_i32_0 : i32, i32
  }
  func.func @transform_5(%arg0: i32) -> (i32, i32) {
    %c0_i32 = arith.constant 0 : i32
    %c0_i32_0 = arith.constant 0 : i32
    %c0_i32_1 = arith.constant 0 : i32
    return %c0_i32, %c0_i32_0 : i32, i32
  }
}

</mosaic_0001>

<llo_original>
// kernel: tpu_custom_call.1
$region0: #{tpu_custom_call.1}
  #allocation0 [shape = 'u32[]', space=smem, size = 0x4, offset = 0x4, fixed_abs, tag = 'smem constant byte address 0x4 - core index']
  #allocation1 [shape = 'u32[144,128]{1,0:T(1,128)}', space=vmem, size = 0x12000, scoped, tag = 'internal scratch']
  %s0 = inlined_call_operand.hbm [shape: f32[8,32], index: 0, kind: input, shape index: {}]
  %s1 = inlined_call_operand.vmem [shape: f32[1,32], index: 1, kind: input, shape index: {}]
  %s2 = inlined_call_operand.vmem [shape: f32[1,32], index: 2, kind: input, shape index: {}]
  %s3 = inlined_call_operand.hbm [shape: f32[32,128], index: 3, kind: input, shape index: {}]
  %s4 = inlined_call_operand.vmem [shape: f32[1,128], index: 4, kind: input, shape index: {}]
  %s5 = inlined_call_operand.hbm [shape: f32[8,128], index: 5, kind: output, shape index: {}]
  %s6 = sld [smem:[#allocation0]]
  $region38: #{tpu_custom_call.1} parent=0
    _
  %s8 = ssub.s32 1, %s6
  %s9 = scalar_select 0, %s8, %s6
  $region1: #{tpu_custom_call.1} parent=0
    #allocation2 [shape = 'u8[4096]{0}', space=vmem, size = 0x1000, scoped, tag = 'input window, operand 0, single buffered']
    #allocation3 [shape = 's32[1]{0}', space=sflag, size = 0x4, scoped, tag = 'scoped memory for tpu_custom_call.1']
    #allocation4 [shape = 's32[1]{0}', space=sflag, size = 0x4, scoped, tag = 'scoped memory for tpu_custom_call.1']
    #allocation5 [shape = 'u8[16384]{0}', space=vmem, size = 0x4000, scoped, tag = 'input window, operand 3, single buffered']
    #allocation6 [shape = 's32[1]{0}', space=sflag, size = 0x4, scoped, tag = 'scoped memory for tpu_custom_call.1']
    #allocation7 [shape = 'u8[4096]{0}', space=vmem, size = 0x1000, scoped, tag = 'output window, operand 0, single buffered']
    %10 = vsyncpa [#allocation3], 0
    %11 = vsyncpa [#allocation6], 0
    %12 = vsyncpa [#allocation4], 0
    // Predicated region
    $region2: #{tpu_custom_call.1} parent=1 // pred_check
      _
    $region3: #{tpu_custom_call.1} parent=1 // pred_check_branch
      %14 = sbr.rel (0) target = $region5
    $region4: #{tpu_custom_call.1} parent=1 // pred_region
      %s16 = ssub.s32 128, 128
      %17 = vsyncadd [#allocation3], %s16
      %s19 = sshll.u32 [#allocation2], 4
      %s20 = int_to_ptr.vmem [resolvable:$true] %s19
      %22 = dma.hbm_to_vmem [thread:$0]  %s0, 128, %s20, [#allocation3]
    $region5: #{tpu_custom_call.1} parent=1 // pred_fallthru
      _
    // Predicated region
    $region6: #{tpu_custom_call.1} parent=1 // pred_check
      _
    $region7: #{tpu_custom_call.1} parent=1 // pred_check_branch
      %24 = sbr.rel (0) target = $region9
    $region8: #{tpu_custom_call.1} parent=1 // pred_region
      _
    $region9: #{tpu_custom_call.1} parent=1 // pred_fallthru
      _
    // Predicated region
    $region10: #{tpu_custom_call.1} parent=1 // pred_check
      _
    $region11: #{tpu_custom_call.1} parent=1 // pred_check_branch
      %26 = sbr.rel (0) target = $region13
    $region12: #{tpu_custom_call.1} parent=1 // pred_region
      _
    $region13: #{tpu_custom_call.1} parent=1 // pred_fallthru
      _
    // Predicated region
    $region14: #{tpu_custom_call.1} parent=1 // pred_check
      _
    $region15: #{tpu_custom_call.1} parent=1 // pred_check_branch
      %28 = sbr.rel (0) target = $region17
    $region16: #{tpu_custom_call.1} parent=1 // pred_region
      %s30 = ssub.s32 512, 512
      %31 = vsyncadd [#allocation6], %s30
      %s32 = sshll.u32 [#allocation5], 4
      %s33 = int_to_ptr.vmem [resolvable:$true] %s32
      %38 = dma.hbm_to_vmem [thread:$0]  %s3, 512, %s33, [#allocation6], 128, 128, 8
    $region17: #{tpu_custom_call.1} parent=1 // pred_fallthru
      _
    // Predicated region
    $region18: #{tpu_custom_call.1} parent=1 // pred_check
      _
    $region19: #{tpu_custom_call.1} parent=1 // pred_check_branch
      %40 = sbr.rel (0) target = $region21
    $region20: #{tpu_custom_call.1} parent=1 // pred_region
      _
    $region21: #{tpu_custom_call.1} parent=1 // pred_fallthru
      _
    // Predicated region
    $region22: #{tpu_custom_call.1} parent=1 // pred_check
      _
    $region23: #{tpu_custom_call.1} parent=1 // pred_check_branch
      %42 = sbr.rel (0) target = $region25
    $region24: #{tpu_custom_call.1} parent=1 // pred_region
      %43 = dma.done [#allocation3], 128
    $region25: #{tpu_custom_call.1} parent=1 // pred_fallthru
      _
    // Predicated region
    $region26: #{tpu_custom_call.1} parent=1 // pred_check
      _
    $region27: #{tpu_custom_call.1} parent=1 // pred_check_branch
      %45 = sbr.rel (0) target = $region29
    $region28: #{tpu_custom_call.1} parent=1 // pred_region
      %46 = dma.done [#allocation6], 512
    $region29: #{tpu_custom_call.1} parent=1 // pred_fallthru
      _
    %v47 = vld [vmem:[#allocation2] sm:$0xff]
    %vm48 = vcmask 261120
    %v49 = vsel %vm48, %v47, 0.0
    %v50 = vrot.slane %v49, 4
    %v51 = vadd.f32 %v49, %v50
    %v52 = vrot.slane %v51, 2
    %v53 = vadd.f32 %v51, %v52
    %v54 = vrot.slane %v53, 1
    %v55 = vadd.f32 %v53, %v54
    %v56 = vmul.f32 %v55, 0.125
    %v57 = vsub.f32 %v47, %v56
    %v58 = vmul.f32 %v57, %v57
    %v59 = vsel %vm48, %v58, 0.0
    %v60 = vrot.slane %v59, 4
    %v61 = vadd.f32 %v59, %v60
    %v62 = vrot.slane %v61, 2
    %v63 = vadd.f32 %v61, %v62
    %v64 = vrot.slane %v63, 1
    %v65 = vadd.f32 %v63, %v64
    %v66 = vmul.f32 %v65, 0.125
    %v67 = vld [vmem:[%s1] sm:$0x1]
    %v68 = vadd.f32 %v66, 1e-05
    %v69 = vrsqrt.pop %v68
    %v70 = vmul.f32 %v67, %v69
    %v71 = vld [vmem:[%s2] sm:$0x1]
    %v72 = vmul.f32 %v56, %v70
    %v73 = vsub.f32 %v71, %v72
    %v75 = vlaneseq
    %v76 = vshrl.u32 %v75, 7
    %v77 = vsub.s32 0, %v76
    %v78 = vrot.slane %v70, %v77
    %v80 = vmul.f32 %v47, %v78
    %v82 = vlaneseq
    %v83 = vshrl.u32 %v82, 7
    %v84 = vsub.s32 0, %v83
    %v85 = vrot.slane %v73, %v84
    %v87 = vadd.f32 %v80, %v85
    %v88 = vmax.f32 %v87, 0.0
    %v89 = vld [vmem:[#allocation5] sm:$0xff]
    %v90 = vld [vmem:[#allocation5 + $0x8] sm:$0xff]
    %v91 = vld [vmem:[#allocation5 + $0x10] sm:$0xff]
    %v92 = vld [vmem:[#allocation5 + $0x18] sm:$0xff]
    %v93 = vld [vmem:[%s4] sm:$0x1]
    %v95 = vlaneseq
    %v96 = vshrl.u32 %v95, 7
    %v97 = vsub.s32 0, %v96
    %v98 = vrot.slane %v93, %v97
    %v101 = vsel %vm48, %v88, 0
    %103 = vmatprep.subr.mxu0 0.0
    %104 = vmatpush1.msra.mxu0 0.0
    %105 = vmatprep.subr.mxu0 0.0
    %106 = vmatpush1.msra.mxu0 0.0
    %107 = vmatprep.subr.mxu0 0.0
    %108 = vmatpush1.msra.mxu0 0.0
    %109 = vmatprep.subr.mxu0 0.0
    %110 = vmatpush1.msra.mxu0 0.0
    %111 = vmatprep.subr.mxu0 0.0
    %112 = vmatpush1.msra.mxu0 0.0
    %113 = vmatprep.subr.mxu0 0.0
    %114 = vmatpush1.msra.mxu0 0.0
    %115 = vmatprep.subr.mxu0 0.0
    %116 = vmatpush1.msra.mxu0 0.0
    %117 = vmatprep.subr.mxu0 0.0
    %118 = vmatpush1.msra.mxu0 0.0
    %119 = vmatprep.subr.mxu0 0.0
    %120 = vmatpush1.msra.mxu0 0.0
    %121 = vmatprep.subr.mxu0 0.0
    %122 = vmatpush1.msra.mxu0 0.0
    %123 = vmatprep.subr.mxu0 0.0
    %124 = vmatpush1.msra.mxu0 0.0
    %125 = vmatprep.subr.mxu0 0.0
    %126 = vmatpush1.msra.mxu0 0.0
    %127 = vmatprep.subr.mxu0 0.0
    %128 = vmatpush1.msra.mxu0 %v92
    %129 = vmatprep.subr.mxu0 0.0
    %130 = vmatpush1.msra.mxu0 %v91
    %131 = vmatprep.subr.mxu0 0.0
    %132 = vmatpush1.msra.mxu0 %v90
    %133 = vmatprep.subr.mxu0 0.0
    %134 = vmatpush1.msra.mxu0 %v89
    %135 = vmatprep.subr.mxu0 0.0
    %136 = vmatpush2.msra.mxu0 0.0
    %137 = vmatprep.subr.mxu0 0.0
    %138 = vmatpush2.msra.mxu0 0.0
    %139 = vmatprep.subr.mxu0 0.0
    %140 = vmatpush2.msra.mxu0 0.0
    %141 = vmatprep.subr.mxu0 0.0
    %142 = vmatpush2.msra.mxu0 0.0
    %143 = vmatprep.subr.mxu0 0.0
    %144 = vmatpush2.msra.mxu0 0.0
    %145 = vmatprep.subr.mxu0 0.0
    %146 = vmatpush2.msra.mxu0 0.0
    %147 = vmatprep.subr.mxu0 0.0
    %148 = vmatpush2.msra.mxu0 0.0
    %149 = vmatprep.subr.mxu0 0.0
    %150 = vmatpush2.msra.mxu0 0.0
    %151 = vmatprep.subr.mxu0 0.0
    %152 = vmatpush2.msra.mxu0 0.0
    %153 = vmatprep.subr.mxu0 0.0
    %154 = vmatpush2.msra.mxu0 0.0
    %155 = vmatprep.subr.mxu0 0.0
    %156 = vmatpush2.msra.mxu0 0.0
    %157 = vmatprep.subr.mxu0 0.0
    %158 = vmatpush2.msra.mxu0 0.0
    %159 = vmatprep.subr.mxu0 0.0
    %160 = vmatpush2.msra.mxu0 0.0
    %161 = vmatprep.subr.mxu0 0.0
    %162 = vmatpush2.msra.mxu0 0.0
    %163 = vmatprep.subr.mxu0 0.0
    %164 = vmatpush2.msra.mxu0 0.0
    %165 = vmatprep.subr.mxu0 0.0
    %166 = vmatpush2.msra.mxu0 0.0
    %167 = vmatprep.mubr.f32.mxu0 0.0
    %168 = vmatmul.mubr.f32.gmra.mxu0 %v101
    %v169 = vpop.f32.mrf.mxu0
    %v170 = vadd.f32 %v98, %v169
    %v171 = vpop.f32.mrf.mxu0
    %172 = vdwg.mxu0
    %173 = vst [vmem:[#allocation7] sm:$0xff] %v170
    // Predicated region
    $region30: #{tpu_custom_call.1} parent=1 // pred_check
      _
    $region31: #{tpu_custom_call.1} parent=1 // pred_check_branch
      %175 = sbr.rel (0) target = $region33
    $region32: #{tpu_custom_call.1} parent=1 // pred_region
      %s177 = ssub.s32 128, 128
      %178 = vsyncadd [#allocation4], %s177
      %s180 = sshll.u32 [#allocation7], 4
      %s181 = int_to_ptr.vmem [resolvable:$true] %s180
      %183 = dma.vmem_to_hbm [thread:$0]  %s181, 128, %s5, [#allocation4]
    $region33: #{tpu_custom_call.1} parent=1 // pred_fallthru
      _
    // Predicated region
    $region34: #{tpu_custom_call.1} parent=1 // pred_check
      _
    $region35: #{tpu_custom_call.1} parent=1 // pred_check_branch
      %185 = sbr.rel (0) target = $region37
    $region36: #{tpu_custom_call.1} parent=1 // pred_region
      %186 = dma.done [#allocation4], 128
    $region37: #{tpu_custom_call.1} parent=1 // pred_fallthru
      _
    %187 = vsyncpa [#allocation3], 1
    %188 = vsyncpa [#allocation6], 1
    %189 = vsyncpa [#allocation4], 1

</llo_original>
